<compile_context>
chip_gen: v5e
topology: v5e:2x2
jax: 0.10.0
libtpu: 0.0.40
codegen_flags: <defaults>
</compile_context>

<pallas_src>
import jax
import jax.numpy as jnp
from jax.experimental import pallas as pl
from jax.experimental.pallas import tpu as pltpu


# ---------------------------------------------------------------------------
# Tile selection helpers
# ---------------------------------------------------------------------------
def _round_up(v, m):
    return ((v + m - 1) // m) * m


def _pick_row_tile(n, cap):
    """Row (M) tile for L / output.  Prefers tiles that divide n exactly (so L
    never needs an O(n^2) padding pass) and splits rows in two once n >= 512
    so a 2-TensorCore part (v7x) can shard the row axis across both cores."""
    if n <= cap:
        if n >= 512 and n % 2 == 0 and (n // 2) % 8 == 0:
            return n // 2
        return n
    for t in range(cap, 7, -8):            # largest mult-of-8 divisor <= cap
        if n % t == 0:
            return t
    return cap                             # rare: forces a row pad of L


def _pick_k_tile(n, cap):
    """Contraction (K) tile: full extent when it fits, else the largest
    multiple-of-128 divisor of n (no padding); cap only as a last resort."""
    if n <= cap:
        return n
    for t in range(cap, 127, -128):
        if n % t == 0:
            return t
    return cap                             # rare: forces a K pad of L and x


# ---------------------------------------------------------------------------
# Kernel
# ---------------------------------------------------------------------------
def _make_heat_kernel(tk, k_align, x_resident, acc_in_out):
    """o = (-k) * (L @ x) with f32 accumulation.

    negk_ref : SMEM (1,) scalar holding -k (module's `self.L = -L` folded here)
    l_ref    : VMEM (tm, tk) tile of L (un-negated)
    x_ref    : VMEM (K_total, tn) resident block of x, or (tk, tn) tile
    o_ref    : VMEM (tm, tn) output tile, resident across the K grid axis
    """
    def kernel(negk_ref, l_ref, x_ref, o_ref, *scratch):
        acc_ref = o_ref if acc_in_out else scratch[0]
        kk = pl.program_id(2)

        @pl.when(kk == 0)
        def _():
            acc_ref[...] = jnp.zeros_like(acc_ref)

        if x_resident:
            # x stays in VMEM for the whole (i, kk) sweep; slice the K chunk.
            k_start = pl.multiple_of(kk * tk, k_align)
            x_tile = x_ref[pl.ds(k_start, tk), :]
        else:
            x_tile = x_ref[...]

        acc_ref[...] += jnp.dot(l_ref[...], x_tile,
                                preferred_element_type=jnp.float32)

        @pl.when(kk == pl.num_programs(2) - 1)
        def _():
            o_ref[...] = (negk_ref[0] * acc_ref[...]).astype(o_ref.dtype)

    return kernel


# ---------------------------------------------------------------------------
# Wrapper
# ---------------------------------------------------------------------------
def heat_diffusion_forward(L, x, k=1.0, *, use_bf16=False,
                           tm_cap=512, tk_cap=1024, tn_cap=512,
                           x_resident_max_bytes=8 * 1024 * 1024,
                           vmem_cap_bytes=48 * 1024 * 1024):
    """Pallas implementation of HeatDiffusion.forward: k * ((-L) @ x).

    For best performance with `use_bf16=True`, hold L persistently in bf16 at
    module init (the cast here would otherwise be a per-call O(n^2) pass).
    On v5e/v6e (128 MiB VMEM) `tn_cap` / `vmem_cap_bytes` may be raised for
    very large feature dims; the defaults are v7x-safe.
    """
    n, n2 = L.shape
    n3, dim = x.shape
    assert n == n2 == n3, "L must be (n, n) and x must be (n, dim)"
    out_dtype = x.dtype

    in_dtype = jnp.bfloat16 if use_bf16 else L.dtype

    # ---- tile selection -------------------------------------------------
    tm = _pick_row_tile(n, tm_cap)                    # output / L rows
    tk = _pick_k_tile(n, tk_cap)                      # contraction dim
    tn = min(_round_up(max(dim, 1), 128), tn_cap)     # lane-dense feature tile
    n_rows_p = _round_up(n, tm)
    n_k_p = _round_up(n, tk)
    dim_p = _round_up(dim, tn)

    # ---- input preparation (no O(n^2) passes over L in the common case) --
    L_in = L if L.dtype == in_dtype else L.astype(in_dtype)
    x_in = x if x.dtype == in_dtype else x.astype(in_dtype)

    if (n_rows_p, n_k_p) != (n, n):
        # Rare fallback: n has no tile-aligned divisor <= cap.
        # TODO(synk): replace this pad with in-kernel K/M tail masking.
        L_in = jnp.pad(L_in, ((0, n_rows_p - n), (0, n_k_p - n)))
    if (n_k_p, dim_p) != (n, dim):
        x_in = jnp.pad(x_in, ((0, n_k_p - n), (0, dim_p - dim)))  # cheap O(n*dim)

    in_item = jnp.dtype(in_dtype).itemsize
    out_item = jnp.dtype(out_dtype).itemsize

    # Keep x fully VMEM-resident (one HBM pass over x, total) when it fits.
    x_resident = (n_k_p * tn * in_item) <= x_resident_max_bytes

    acc_in_out = out_dtype == jnp.float32
    kernel = _make_heat_kernel(tk, 128 if tk % 128 == 0 else tk,
                               x_resident, acc_in_out)
    scratch_shapes = [] if acc_in_out else [pltpu.VMEM((tm, tn), jnp.float32)]

    # Fold the module's `self.L = -L` into the epilogue scale: pass -k.
    neg_k = jnp.asarray(-1.0 * k, dtype=jnp.float32).reshape(1)

    # Grid order (j, i, kk): j outermost so the full-K x block (indexed only
    # by j) is fetched once per feature block; kk innermost keeps the output
    # block resident while accumulating.
    grid = (dim_p // tn, n_rows_p // tm, n_k_p // tk)

    if x_resident:
        x_spec = pl.BlockSpec((n_k_p, tn), lambda j, i, kk, negk: (0, j))
        x_buf_bytes = 2 * n_k_p * tn * in_item
    else:
        x_spec = pl.BlockSpec((tk, tn), lambda j, i, kk, negk: (kk, j))
        x_buf_bytes = 2 * tk * tn * in_item

    vmem_needed = (2 * tm * tk * in_item          # L tiles, double-buffered
                   + x_buf_bytes                  # x block(s)
                   + 2 * tm * tn * out_item       # output tiles
                   + (0 if acc_in_out else tm * tn * 4))
    vmem_limit = int(min(max(vmem_needed + vmem_needed // 2, 16 * 1024 * 1024),
                         vmem_cap_bytes))

    out = pl.pallas_call(
        kernel,
        out_shape=jax.ShapeDtypeStruct((n_rows_p, dim_p), out_dtype),
        grid_spec=pltpu.PrefetchScalarGridSpec(
            num_scalar_prefetch=1,                # -k lands in SMEM
            grid=grid,
            in_specs=[
                pl.BlockSpec((tm, tk), lambda j, i, kk, negk: (i, kk)),  # L
                x_spec,                                                   # x
            ],
            out_specs=pl.BlockSpec((tm, tn), lambda j, i, kk, negk: (i, j)),
            scratch_shapes=scratch_shapes,
        ),
        compiler_params=pltpu.CompilerParams(
            dimension_semantics=("parallel", "parallel", "arbitrary"),
            vmem_limit_bytes=vmem_limit,
        ),
    )(neg_k, L_in, x_in)

    if (n_rows_p, dim_p) != (n, dim):
        out = out[:n, :dim]
    return out


# ---------------------------------------------------------------------------
# Self-test
# ---------------------------------------------------------------------------
if __name__ == "__main__":
    key = jax.random.PRNGKey(0)

    def make_case(case_key, n, dim, dtype=jnp.float32):
        k_L, k_x = jax.random.split(case_key)
        A = jax.random.uniform(k_L, (n, n), dtype=dtype)
        A = 0.5 * (A + A.T)
        Lap = jnp.diag(jnp.sum(A, axis=1)) - A     # graph Laplacian
        xv = jax.random.normal(k_x, (n, dim), dtype=dtype)
        return Lap, xv

    k1, k2 = jax.random.split(key)
    t = 0.0  # unused by the forward pass (autonomous system)

    # Case 1: small graph; feature dim < 128 (padded to a full lane inside).
    n, dim, k_coef = 256, 64, 0.5
    L, x = make_case(k1, n, dim)
    out = jax.block_until_ready(heat_diffusion_forward(L, x, k=k_coef))
    ref = k_coef * jnp.dot(-L, x, precision=jax.lax.Precision.HIGHEST)
    assert out.shape == (n, dim)
    assert jnp.allclose(out, ref, rtol=1e-4, atol=1e-2), "case 1 mismatch"

    # Case 2: larger graph exercising the split row axis (2 'i' blocks for the
    # v7x megacore path), VMEM-resident x, and a non-multiple-of-128 dim.
    n, dim, k_coef = 512, 96, 1.25
    L, x = make_case(k2, n, dim)
    out = jax.block_until_ready(heat_diffusion_forward(L, x, k=k_coef))
    ref = k_coef * jnp.dot(-L, x, precision=jax.lax.Precision.HIGHEST)
    assert out.shape == (n, dim)
    assert jnp.allclose(out, ref, rtol=5e-4, atol=5e-2), "case 2 mismatch"

    print("KERNEL_OK")
</pallas_src>

<mosaic_0001>
module attributes {stable_mosaic.version = 11 : i64} {
  func.func @kernel(%arg0: i32, %arg1: i32, %arg2: i32, %arg3: memref<1xf32, #tpu.memory_space<smem>>, %arg4: memref<256x256xf32, #tpu.memory_space<vmem>>, %arg5: memref<256x128xf32, #tpu.memory_space<vmem>>, %arg6: memref<256x128xf32, #tpu.memory_space<vmem>>) attributes {dimension_semantics = [#tpu.dimension_semantics<parallel>, #tpu.dimension_semantics<parallel>, #tpu.dimension_semantics<arbitrary>], iteration_bounds = array<i64: 1, 1, 1>, scalar_prefetch = 1 : i64, scratch_operands = 0 : i64, tpu.core_type = #tpu.core_type<tc>, window_params = [{transform_indices = @transform_0, window_bounds = array<i64: 256, 256>}, {transform_indices = @transform_1, window_bounds = array<i64: 256, 128>}, {transform_indices = @transform_2, window_bounds = array<i64: 256, 128>}]} {
    %c0_i32 = arith.constant 0 : i32
    %0 = arith.cmpi eq, %arg2, %c0_i32 : i32
    %1 = arith.extui %0 : i1 to i32
    %c0_i32_0 = arith.constant 0 : i32
    %2 = arith.cmpi ne, %1, %c0_i32_0 : i32
    scf.if %2 {
      %cst_9 = arith.constant 0.000000e+00 : f32
      %15 = vector.broadcast %cst_9 : f32 to vector<256x128xf32>
      %c0_10 = arith.constant 0 : index
      %c0_11 = arith.constant 0 : index
      %16 = vector.load %arg6[%c0_10, %c0_11] : memref<256x128xf32, #tpu.memory_space<vmem>>, vector<256x128xf32>
      tpu.vector_store %arg6[%c0_10, %c0_11], %15 {strides = array<i32>} : memref<256x128xf32, #tpu.memory_space<vmem>>, vector<256x128xf32>,
    } else {
    }
    %c256_i32 = arith.constant 256 : i32
    %3 = arith.muli %arg2, %c256_i32 : i32
    %4 = tpu.assume_multiple %3, 128 : i32
    %5 = arith.index_cast %4 : i32 to index
    %c0 = arith.constant 0 : index
    %6 = vector.load %arg5[%5, %c0] : memref<256x128xf32, #tpu.memory_space<vmem>>, vector<256x128xf32>
    %c0_1 = arith.constant 0 : index
    %c0_2 = arith.constant 0 : index
    %7 = vector.load %arg6[%c0_1, %c0_2] : memref<256x128xf32, #tpu.memory_space<vmem>>, vector<256x128xf32>
    %c0_3 = arith.constant 0 : index
    %c0_4 = arith.constant 0 : index
    %8 = vector.load %arg4[%c0_3, %c0_4] : memref<256x256xf32, #tpu.memory_space<vmem>>, vector<256x256xf32>
    %cst = arith.constant dense<0.000000e+00> : vector<256x128xf32>
    %9 = tpu.matmul %8, %6, %cst {dimension_numbers = #tpu.dot_dimension_numbers<[1], [0], [0], [1], [0, 0, 1, 1], [], []>} : vector<256x256xf32>, vector<256x128xf32>, vector<256x128xf32> -> vector<256x128xf32>
    %10 = arith.addf %7, %9 : vector<256x128xf32>
    %c0_5 = arith.constant 0 : index
    %c0_6 = arith.constant 0 : index
    %11 = vector.load %arg6[%c0_5, %c0_6] : memref<256x128xf32, #tpu.memory_space<vmem>>, vector<256x128xf32>
    tpu.vector_store %arg6[%c0_5, %c0_6], %10 {strides = array<i32>} : memref<256x128xf32, #tpu.memory_space<vmem>>, vector<256x128xf32>,
    %c0_i32_7 = arith.constant 0 : i32
    %12 = arith.cmpi eq, %arg2, %c0_i32_7 : i32
    %13 = arith.extui %12 : i1 to i32
    %c0_i32_8 = arith.constant 0 : i32
    %14 = arith.cmpi ne, %13, %c0_i32_8 : i32
    scf.if %14 {
      %c0_9 = arith.constant 0 : index
      %15 = memref.load %arg3[%c0_9] : memref<1xf32, #tpu.memory_space<smem>>
      %c0_10 = arith.constant 0 : index
      %c0_11 = arith.constant 0 : index
      %16 = vector.load %arg6[%c0_10, %c0_11] : memref<256x128xf32, #tpu.memory_space<vmem>>, vector<256x128xf32>
      %17 = vector.broadcast %15 : f32 to vector<256x128xf32>
      %18 = arith.mulf %17, %16 : vector<256x128xf32>
      %c0_12 = arith.constant 0 : index
      %c0_13 = arith.constant 0 : index
      %19 = vector.load %arg6[%c0_12, %c0_13] : memref<256x128xf32, #tpu.memory_space<vmem>>, vector<256x128xf32>
      tpu.vector_store %arg6[%c0_12, %c0_13], %18 {strides = array<i32>} : memref<256x128xf32, #tpu.memory_space<vmem>>, vector<256x128xf32>,
    } else {
    }
    return
  }
  func.func @transform_0(%arg0: i32, %arg1: i32, %arg2: i32, %arg3: memref<1xf32, #tpu.memory_space<smem>>) -> (i32, i32) {
    %c0_i32 = arith.constant 0 : i32
    return %arg1, %arg2 : i32, i32
  }
  func.func @transform_1(%arg0: i32, %arg1: i32, %arg2: i32, %arg3: memref<1xf32, #tpu.memory_space<smem>>) -> (i32, i32) {
    %c0_i32 = arith.constant 0 : i32
    %c0_i32_0 = arith.constant 0 : i32
    return %c0_i32, %arg0 : i32, i32
  }
  func.func @transform_2(%arg0: i32, %arg1: i32, %arg2: i32, %arg3: memref<1xf32, #tpu.memory_space<smem>>) -> (i32, i32) {
    %c0_i32 = arith.constant 0 : i32
    return %arg1, %arg0 : i32, i32
  }
}

</mosaic_0001>

<llo_original>
// kernel: tpu_custom_call.1
$region0: #{tpu_custom_call.1}
  #allocation0 [shape = 'u32[]', space=smem, size = 0x4, offset = 0x4, fixed_abs, tag = 'smem constant byte address 0x4 - core index']
  #allocation1 [shape = 'u32[72,128]{1,0:T(1,128)}', space=vmem, size = 0x9000, scoped, tag = 'internal scratch']
  #allocation2 [shape = 's32[1]{0}', space=sflag, size = 0x4, scoped, tag = 'scoped memory for tpu_custom_call.1']
  #allocation3 [shape = 'f32[1]{0:T(128)S(6)}', space=smem, size = 0x200, scoped, tag = 'prefetched SMEM operand 0']
  %s0 = inlined_call_operand.<no memory space> [shape: f32[1], index: 0, kind: input, shape index: {}]
  %s1 = inlined_call_operand.hbm [shape: f32[256,256], index: 1, kind: input, shape index: {}]
  %s2 = inlined_call_operand.hbm [shape: f32[256,128], index: 2, kind: input, shape index: {}]
  %s3 = inlined_call_operand.hbm [shape: f32[256,128], index: 3, kind: output, shape index: {}]
  %s4 = sld [smem:[#allocation0]]
  $region34: #{tpu_custom_call.1} parent=0
    _
  %s6 = ssub.s32 1, %s4
  %s7 = scalar_select 0, %s6, %s4
  %8 = sst [smem:[#allocation3]] %s0
  $region1: #{tpu_custom_call.1} parent=0
    #allocation4 [shape = 'u8[262144]{0}', space=vmem, size = 0x40000, scoped, tag = 'input window, operand 1, single buffered']
    #allocation5 [shape = 's32[1]{0}', space=sflag, size = 0x4, scoped, tag = 'scoped memory for tpu_custom_call.1']
    #allocation6 [shape = 's32[1]{0}', space=sflag, size = 0x4, scoped, tag = 'scoped memory for tpu_custom_call.1']
    #allocation7 [shape = 'u8[131072]{0}', space=vmem, size = 0x20000, scoped, tag = 'input window, operand 2, single buffered']
    #allocation8 [shape = 's32[1]{0}', space=sflag, size = 0x4, scoped, tag = 'scoped memory for tpu_custom_call.1']
    #allocation9 [shape = 'u8[131072]{0}', space=vmem, size = 0x20000, scoped, tag = 'output window, operand 0, single buffered']
    %9 = vsyncpa [#allocation5], 0
    %10 = vsyncpa [#allocation8], 0
    %11 = vsyncpa [#allocation6], 0
    // Predicated region
    $region2: #{tpu_custom_call.1} parent=1 // pred_check
      _
    $region3: #{tpu_custom_call.1} parent=1 // pred_check_branch
      %13 = sbr.rel (0) target = $region5
    $region4: #{tpu_custom_call.1} parent=1 // pred_region
      %15 = vsyncadd [#allocation5], 0
      %s16 = sshll.u32 %s1, 4
      %s17 = int_to_ptr.hbm [resolvable:$true] %s16
      %s18 = sshll.u32 [#allocation4], 4
      %s19 = int_to_ptr.vmem [resolvable:$true] %s18
      %24 = dma.hbm_to_vmem [thread:$0]  %s17, 8192, %s19, [#allocation5], 256, 256, 16
    $region5: #{tpu_custom_call.1} parent=1 // pred_fallthru
      _
    // Predicated region
    $region6: #{tpu_custom_call.1} parent=1 // pred_check
      _
    $region7: #{tpu_custom_call.1} parent=1 // pred_check_branch
      %26 = sbr.rel (0) target = $region9
    $region8: #{tpu_custom_call.1} parent=1 // pred_region
      %28 = vsyncadd [#allocation8], 0
      %s29 = sshll.u32 %s2, 4
      %s30 = int_to_ptr.hbm [resolvable:$true] %s29
      %s31 = sshll.u32 [#allocation7], 4
      %s32 = int_to_ptr.vmem [resolvable:$true] %s31
      %37 = dma.hbm_to_vmem [thread:$0]  %s30, 4096, %s32, [#allocation8], 128, 128, 8
    $region9: #{tpu_custom_call.1} parent=1 // pred_fallthru
      _
    // Predicated region
    $region10: #{tpu_custom_call.1} parent=1 // pred_check
      _
    $region11: #{tpu_custom_call.1} parent=1 // pred_check_branch
      %39 = sbr.rel (0) target = $region13
    $region12: #{tpu_custom_call.1} parent=1 // pred_region
      %41 = dma.done [#allocation5], 8192
    $region13: #{tpu_custom_call.1} parent=1 // pred_fallthru
      _
    // Predicated region
    $region14: #{tpu_custom_call.1} parent=1 // pred_check
      _
    $region15: #{tpu_custom_call.1} parent=1 // pred_check_branch
      %43 = sbr.rel (0) target = $region17
    $region16: #{tpu_custom_call.1} parent=1 // pred_region
      %45 = dma.done [#allocation8], 4096
    $region17: #{tpu_custom_call.1} parent=1 // pred_fallthru
      _
    %p46 = scmp.eq.s32.totalorder 0, 0
    // Predicated region
    $region18: #{tpu_custom_call.1} parent=1 // pred_check
      %p47 = pneg %p46
    $region19: #{tpu_custom_call.1} parent=1 // pred_check_branch
      %49 = sbr.rel (%p47) target = $region21
    $region20: #{tpu_custom_call.1} parent=1 // pred_region
      %50 = vst [vmem:[#allocation9] sm:$0xff] 0.0
      %51 = vst [vmem:[#allocation9 + $0x8] sm:$0xff] 0.0
      %52 = vst [vmem:[#allocation9 + $0x10] sm:$0xff] 0.0
      %53 = vst [vmem:[#allocation9 + $0x18] sm:$0xff] 0.0
      %54 = vst [vmem:[#allocation9 + $0x20] sm:$0xff] 0.0
      %55 = vst [vmem:[#allocation9 + $0x28] sm:$0xff] 0.0
      %56 = vst [vmem:[#allocation9 + $0x30] sm:$0xff] 0.0
      %57 = vst [vmem:[#allocation9 + $0x38] sm:$0xff] 0.0
      %58 = vst [vmem:[#allocation9 + $0x40] sm:$0xff] 0.0
      %59 = vst [vmem:[#allocation9 + $0x48] sm:$0xff] 0.0
      %60 = vst [vmem:[#allocation9 + $0x50] sm:$0xff] 0.0
      %61 = vst [vmem:[#allocation9 + $0x58] sm:$0xff] 0.0
      %62 = vst [vmem:[#allocation9 + $0x60] sm:$0xff] 0.0
      %63 = vst [vmem:[#allocation9 + $0x68] sm:$0xff] 0.0
      %64 = vst [vmem:[#allocation9 + $0x70] sm:$0xff] 0.0
      %65 = vst [vmem:[#allocation9 + $0x78] sm:$0xff] 0.0
      %66 = vst [vmem:[#allocation9 + $0x80] sm:$0xff] 0.0
      %67 = vst [vmem:[#allocation9 + $0x88] sm:$0xff] 0.0
      %68 = vst [vmem:[#allocation9 + $0x90] sm:$0xff] 0.0
      %69 = vst [vmem:[#allocation9 + $0x98] sm:$0xff] 0.0
      %70 = vst [vmem:[#allocation9 + $0xa0] sm:$0xff] 0.0
      %71 = vst [vmem:[#allocation9 + $0xa8] sm:$0xff] 0.0
      %72 = vst [vmem:[#allocation9 + $0xb0] sm:$0xff] 0.0
      %73 = vst [vmem:[#allocation9 + $0xb8] sm:$0xff] 0.0
      %74 = vst [vmem:[#allocation9 + $0xc0] sm:$0xff] 0.0
      %75 = vst [vmem:[#allocation9 + $0xc8] sm:$0xff] 0.0
      %76 = vst [vmem:[#allocation9 + $0xd0] sm:$0xff] 0.0
      %77 = vst [vmem:[#allocation9 + $0xd8] sm:$0xff] 0.0
      %78 = vst [vmem:[#allocation9 + $0xe0] sm:$0xff] 0.0
      %79 = vst [vmem:[#allocation9 + $0xe8] sm:$0xff] 0.0
      %80 = vst [vmem:[#allocation9 + $0xf0] sm:$0xff] 0.0
      %81 = vst [vmem:[#allocation9 + $0xf8] sm:$0xff] 0.0
    $region21: #{tpu_custom_call.1} parent=1 // pred_fallthru
      _
    %s82 = smul.u32 0, 256
    %s83 = scalar_lea.vmem [#allocation7], %s82
    %v84 = vld [vmem:[%s83] sm:$0xff]
    %v85 = vld [vmem:[%s83 + $0x8] sm:$0xff]
    %v86 = vld [vmem:[%s83 + $0x10] sm:$0xff]
    %v87 = vld [vmem:[%s83 + $0x18] sm:$0xff]
    %v88 = vld [vmem:[%s83 + $0x20] sm:$0xff]
    %v89 = vld [vmem:[%s83 + $0x28] sm:$0xff]
    %v90 = vld [vmem:[%s83 + $0x30] sm:$0xff]
    %v91 = vld [vmem:[%s83 + $0x38] sm:$0xff]
    %v92 = vld [vmem:[%s83 + $0x40] sm:$0xff]
    %v93 = vld [vmem:[%s83 + $0x48] sm:$0xff]
    %v94 = vld [vmem:[%s83 + $0x50] sm:$0xff]
    %v95 = vld [vmem:[%s83 + $0x58] sm:$0xff]
    %v96 = vld [vmem:[%s83 + $0x60] sm:$0xff]
    %v97 = vld [vmem:[%s83 + $0x68] sm:$0xff]
    %v98 = vld [vmem:[%s83 + $0x70] sm:$0xff]
    %v99 = vld [vmem:[%s83 + $0x78] sm:$0xff]
    %v100 = vld [vmem:[%s83 + $0x80] sm:$0xff]
    %v101 = vld [vmem:[%s83 + $0x88] sm:$0xff]
    %v102 = vld [vmem:[%s83 + $0x90] sm:$0xff]
    %v103 = vld [vmem:[%s83 + $0x98] sm:$0xff]
    %v104 = vld [vmem:[%s83 + $0xa0] sm:$0xff]
    %v105 = vld [vmem:[%s83 + $0xa8] sm:$0xff]
    %v106 = vld [vmem:[%s83 + $0xb0] sm:$0xff]
    %v107 = vld [vmem:[%s83 + $0xb8] sm:$0xff]
    %v108 = vld [vmem:[%s83 + $0xc0] sm:$0xff]
    %v109 = vld [vmem:[%s83 + $0xc8] sm:$0xff]
    %v110 = vld [vmem:[%s83 + $0xd0] sm:$0xff]
    %v111 = vld [vmem:[%s83 + $0xd8] sm:$0xff]
    %v112 = vld [vmem:[%s83 + $0xe0] sm:$0xff]
    %v113 = vld [vmem:[%s83 + $0xe8] sm:$0xff]
    %v114 = vld [vmem:[%s83 + $0xf0] sm:$0xff]
    %v115 = vld [vmem:[%s83 + $0xf8] sm:$0xff]
    %v116 = vld [vmem:[#allocation9] sm:$0xff]
    %v117 = vld [vmem:[#allocation9 + $0x8] sm:$0xff]
    %v118 = vld [vmem:[#allocation9 + $0x10] sm:$0xff]
    %v119 = vld [vmem:[#allocation9 + $0x18] sm:$0xff]
    %v120 = vld [vmem:[#allocation9 + $0x20] sm:$0xff]
    %v121 = vld [vmem:[#allocation9 + $0x28] sm:$0xff]
    %v122 = vld [vmem:[#allocation9 + $0x30] sm:$0xff]
    %v123 = vld [vmem:[#allocation9 + $0x38] sm:$0xff]
    %v124 = vld [vmem:[#allocation9 + $0x40] sm:$0xff]
    %v125 = vld [vmem:[#allocation9 + $0x48] sm:$0xff]
    %v126 = vld [vmem:[#allocation9 + $0x50] sm:$0xff]
    %v127 = vld [vmem:[#allocation9 + $0x58] sm:$0xff]
    %v128 = vld [vmem:[#allocation9 + $0x60] sm:$0xff]
    %v129 = vld [vmem:[#allocation9 + $0x68] sm:$0xff]
    %v130 = vld [vmem:[#allocation9 + $0x70] sm:$0xff]
    %v131 = vld [vmem:[#allocation9 + $0x78] sm:$0xff]
    %v132 = vld [vmem:[#allocation9 + $0x80] sm:$0xff]
    %v133 = vld [vmem:[#allocation9 + $0x88] sm:$0xff]
    %v134 = vld [vmem:[#allocation9 + $0x90] sm:$0xff]
    %v135 = vld [vmem:[#allocation9 + $0x98] sm:$0xff]
    %v136 = vld [vmem:[#allocation9 + $0xa0] sm:$0xff]
    %v137 = vld [vmem:[#allocation9 + $0xa8] sm:$0xff]
    %v138 = vld [vmem:[#allocation9 + $0xb0] sm:$0xff]
    %v139 = vld [vmem:[#allocation9 + $0xb8] sm:$0xff]
    %v140 = vld [vmem:[#allocation9 + $0xc0] sm:$0xff]
    %v141 = vld [vmem:[#allocation9 + $0xc8] sm:$0xff]
    %v142 = vld [vmem:[#allocation9 + $0xd0] sm:$0xff]
    %v143 = vld [vmem:[#allocation9 + $0xd8] sm:$0xff]
    %v144 = vld [vmem:[#allocation9 + $0xe0] sm:$0xff]
    %v145 = vld [vmem:[#allocation9 + $0xe8] sm:$0xff]
    %v146 = vld [vmem:[#allocation9 + $0xf0] sm:$0xff]
    %v147 = vld [vmem:[#allocation9 + $0xf8] sm:$0xff]
    %v148 = vld [vmem:[#allocation4] sm:$0xff]
    %v149 = vld [vmem:[#allocation4 + $0x8] sm:$0xff]
    %v150 = vld [vmem:[#allocation4 + $0x10] sm:$0xff]
    %v151 = vld [vmem:[#allocation4 + $0x18] sm:$0xff]
    %v152 = vld [vmem:[#allocation4 + $0x20] sm:$0xff]
    %v153 = vld [vmem:[#allocation4 + $0x28] sm:$0xff]
    %v154 = vld [vmem:[#allocation4 + $0x30] sm:$0xff]
    %v155 = vld [vmem:[#allocation4 + $0x38] sm:$0xff]
    %v156 = vld [vmem:[#allocation4 + $0x40] sm:$0xff]
    %v157 = vld [vmem:[#allocation4 + $0x48] sm:$0xff]
    %v158 = vld [vmem:[#allocation4 + $0x50] sm:$0xff]
    %v159 = vld [vmem:[#allocation4 + $0x58] sm:$0xff]
    %v160 = vld [vmem:[#allocation4 + $0x60] sm:$0xff]
    %v161 = vld [vmem:[#allocation4 + $0x68] sm:$0xff]
    %v162 = vld [vmem:[#allocation4 + $0x70] sm:$0xff]
    %v163 = vld [vmem:[#allocation4 + $0x78] sm:$0xff]
    %v164 = vld [vmem:[#allocation4 + $0x80] sm:$0xff]
    %v165 = vld [vmem:[#allocation4 + $0x88] sm:$0xff]
    %v166 = vld [vmem:[#allocation4 + $0x90] sm:$0xff]
    %v167 = vld [vmem:[#allocation4 + $0x98] sm:$0xff]
    %v168 = vld [vmem:[#allocation4 + $0xa0] sm:$0xff]
    %v169 = vld [vmem:[#allocation4 + $0xa8] sm:$0xff]
    %v170 = vld [vmem:[#allocation4 + $0xb0] sm:$0xff]
    %v171 = vld [vmem:[#allocation4 + $0xb8] sm:$0xff]
    %v172 = vld [vmem:[#allocation4 + $0xc0] sm:$0xff]
    %v173 = vld [vmem:[#allocation4 + $0xc8] sm:$0xff]
    %v174 = vld [vmem:[#allocation4 + $0xd0] sm:$0xff]
    %v175 = vld [vmem:[#allocation4 + $0xd8] sm:$0xff]
    %v176 = vld [vmem:[#allocation4 + $0xe0] sm:$0xff]
    %v177 = vld [vmem:[#allocation4 + $0xe8] sm:$0xff]
    %v178 = vld [vmem:[#allocation4 + $0xf0] sm:$0xff]
    %v179 = vld [vmem:[#allocation4 + $0xf8] sm:$0xff]
    %v180 = vld [vmem:[#allocation4 + $0x100] sm:$0xff]
    %v181 = vld [vmem:[#allocation4 + $0x108] sm:$0xff]
    %v182 = vld [vmem:[#allocation4 + $0x110] sm:$0xff]
    %v183 = vld [vmem:[#allocation4 + $0x118] sm:$0xff]
    %v184 = vld [vmem:[#allocation4 + $0x120] sm:$0xff]
    %v185 = vld [vmem:[#allocation4 + $0x128] sm:$0xff]
    %v186 = vld [vmem:[#allocation4 + $0x130] sm:$0xff]
    %v187 = vld [vmem:[#allocation4 + $0x138] sm:$0xff]
    %v188 = vld [vmem:[#allocation4 + $0x140] sm:$0xff]
    %v189 = vld [vmem:[#allocation4 + $0x148] sm:$0xff]
    %v190 = vld [vmem:[#allocation4 + $0x150] sm:$0xff]
    %v191 = vld [vmem:[#allocation4 + $0x158] sm:$0xff]
    %v192 = vld [vmem:[#allocation4 + $0x160] sm:$0xff]
    %v193 = vld [vmem:[#allocation4 + $0x168] sm:$0xff]
    %v194 = vld [vmem:[#allocation4 + $0x170] sm:$0xff]
    %v195 = vld [vmem:[#allocation4 + $0x178] sm:$0xff]
    %v196 = vld [vmem:[#allocation4 + $0x180] sm:$0xff]
    %v197 = vld [vmem:[#allocation4 + $0x188] sm:$0xff]
    %v198 = vld [vmem:[#allocation4 + $0x190] sm:$0xff]
    %v199 = vld [vmem:[#allocation4 + $0x198] sm:$0xff]
    %v200 = vld [vmem:[#allocation4 + $0x1a0] sm:$0xff]
    %v201 = vld [vmem:[#allocation4 + $0x1a8] sm:$0xff]
    %v202 = vld [vmem:[#allocation4 + $0x1b0] sm:$0xff]
    %v203 = vld [vmem:[#allocation4 + $0x1b8] sm:$0xff]
    %v204 = vld [vmem:[#allocation4 + $0x1c0] sm:$0xff]
    %v205 = vld [vmem:[#allocation4 + $0x1c8] sm:$0xff]
    %v206 = vld [vmem:[#allocation4 + $0x1d0] sm:$0xff]
    %v207 = vld [vmem:[#allocation4 + $0x1d8] sm:$0xff]
    %v208 = vld [vmem:[#allocation4 + $0x1e0] sm:$0xff]
    %v209 = vld [vmem:[#allocation4 + $0x1e8] sm:$0xff]
    %v210 = vld [vmem:[#allocation4 + $0x1f0] sm:$0xff]
    %v211 = vld [vmem:[#allocation4 + $0x1f8] sm:$0xff]
    %212 = vmatpush.msra.mxu0 %v99
    %213 = vmatpush.msra.mxu0 %v98
    %214 = vmatpush.msra.mxu0 %v97
    %215 = vmatpush.msra.mxu0 %v96
    %216 = vmatpush.msra.mxu0 %v95
    %217 = vmatpush.msra.mxu0 %v94
    %218 = vmatpush.msra.mxu0 %v93
    %219 = vmatpush.msra.mxu0 %v92
    %220 = vmatpush.msra.mxu0 %v91
    %221 = vmatpush.msra.mxu0 %v90
    %222 = vmatpush.msra.mxu0 %v89
    %223 = vmatpush.msra.mxu0 %v88
    %224 = vmatpush.msra.mxu0 %v87
    %225 = vmatpush.msra.mxu0 %v86
    %226 = vmatpush.msra.mxu0 %v85
    %227 = vmatpush.msra.mxu0 %v84
    %228 = vmatmul.f32.gmra.mxu0 %v148
    %v229 = vpop.f32.mrf.mxu0
    %v230 = vadd.f32 0.0, %v229
    %231 = vmatmul.f32.gmra.mxu0 %v150
    %v232 = vpop.f32.mrf.mxu0
    %v233 = vadd.f32 0.0, %v232
    %234 = vmatmul.f32.gmra.mxu0 %v152
    %v235 = vpop.f32.mrf.mxu0
    %v236 = vadd.f32 0.0, %v235
    %237 = vmatmul.f32.gmra.mxu0 %v154
    %v238 = vpop.f32.mrf.mxu0
    %v239 = vadd.f32 0.0, %v238
    %240 = vmatmul.f32.gmra.mxu0 %v156
    %v241 = vpop.f32.mrf.mxu0
    %v242 = vadd.f32 0.0, %v241
    %243 = vmatmul.f32.gmra.mxu0 %v158
    %v244 = vpop.f32.mrf.mxu0
    %v245 = vadd.f32 0.0, %v244
    %246 = vmatmul.f32.gmra.mxu0 %v160
    %v247 = vpop.f32.mrf.mxu0
    %v248 = vadd.f32 0.0, %v247
    %249 = vmatmul.f32.gmra.mxu0 %v162
    %v250 = vpop.f32.mrf.mxu0
    %v251 = vadd.f32 0.0, %v250
    %252 = vmatmul.f32.gmra.mxu0 %v164
    %v253 = vpop.f32.mrf.mxu0
    %v254 = vadd.f32 0.0, %v253
    %255 = vmatmul.f32.gmra.mxu0 %v166
    %v256 = vpop.f32.mrf.mxu0
    %v257 = vadd.f32 0.0, %v256
    %258 = vmatmul.f32.gmra.mxu0 %v168
    %v259 = vpop.f32.mrf.mxu0
    %v260 = vadd.f32 0.0, %v259
    %261 = vmatmul.f32.gmra.mxu0 %v170
    %v262 = vpop.f32.mrf.mxu0
    %v263 = vadd.f32 0.0, %v262
    %264 = vmatmul.f32.gmra.mxu0 %v172
    %v265 = vpop.f32.mrf.mxu0
    %v266 = vadd.f32 0.0, %v265
    %267 = vmatmul.f32.gmra.mxu0 %v174
    %v268 = vpop.f32.mrf.mxu0
    %v269 = vadd.f32 0.0, %v268
    %270 = vmatmul.f32.gmra.mxu0 %v176
    %v271 = vpop.f32.mrf.mxu0
    %v272 = vadd.f32 0.0, %v271
    %273 = vmatmul.f32.gmra.mxu0 %v178
    %v274 = vpop.f32.mrf.mxu0
    %v275 = vadd.f32 0.0, %v274
    %276 = vmatmul.f32.gmra.mxu0 %v180
    %v277 = vpop.f32.mrf.mxu0
    %v278 = vadd.f32 0.0, %v277
    %279 = vmatmul.f32.gmra.mxu0 %v182
    %v280 = vpop.f32.mrf.mxu0
    %v281 = vadd.f32 0.0, %v280
    %282 = vmatmul.f32.gmra.mxu0 %v184
    %v283 = vpop.f32.mrf.mxu0
    %v284 = vadd.f32 0.0, %v283
    %285 = vmatmul.f32.gmra.mxu0 %v186
    %v286 = vpop.f32.mrf.mxu0
    %v287 = vadd.f32 0.0, %v286
    %288 = vmatmul.f32.gmra.mxu0 %v188
    %v289 = vpop.f32.mrf.mxu0
    %v290 = vadd.f32 0.0, %v289
    %291 = vmatmul.f32.gmra.mxu0 %v190
    %v292 = vpop.f32.mrf.mxu0
    %v293 = vadd.f32 0.0, %v292
    %294 = vmatmul.f32.gmra.mxu0 %v192
    %v295 = vpop.f32.mrf.mxu0
    %v296 = vadd.f32 0.0, %v295
    %297 = vmatmul.f32.gmra.mxu0 %v194
    %v298 = vpop.f32.mrf.mxu0
    %v299 = vadd.f32 0.0, %v298
    %300 = vmatmul.f32.gmra.mxu0 %v196
    %v301 = vpop.f32.mrf.mxu0
    %v302 = vadd.f32 0.0, %v301
    %303 = vmatmul.f32.gmra.mxu0 %v198
    %v304 = vpop.f32.mrf.mxu0
    %v305 = vadd.f32 0.0, %v304
    %306 = vmatmul.f32.gmra.mxu0 %v200
    %v307 = vpop.f32.mrf.mxu0
    %v308 = vadd.f32 0.0, %v307
    %309 = vmatmul.f32.gmra.mxu0 %v202
    %v310 = vpop.f32.mrf.mxu0
    %v311 = vadd.f32 0.0, %v310
    %312 = vmatmul.f32.gmra.mxu0 %v204
    %v313 = vpop.f32.mrf.mxu0
    %v314 = vadd.f32 0.0, %v313
    %315 = vmatmul.f32.gmra.mxu0 %v206
    %v316 = vpop.f32.mrf.mxu0
    %v317 = vadd.f32 0.0, %v316
    %318 = vmatmul.f32.gmra.mxu0 %v208
    %v319 = vpop.f32.mrf.mxu0
    %v320 = vadd.f32 0.0, %v319
    %321 = vmatmul.f32.gmra.mxu0 %v210
    %v322 = vpop.f32.mrf.mxu0
    %v323 = vadd.f32 0.0, %v322
    %324 = vdwg.mxu0
    %325 = vmatpush.msra.mxu0 %v115
    %326 = vmatpush.msra.mxu0 %v114
    %327 = vmatpush.msra.mxu0 %v113
    %328 = vmatpush.msra.mxu0 %v112
    %329 = vmatpush.msra.mxu0 %v111
    %330 = vmatpush.msra.mxu0 %v110
    %331 = vmatpush.msra.mxu0 %v109
    %332 = vmatpush.msra.mxu0 %v108
    %333 = vmatpush.msra.mxu0 %v107
    %334 = vmatpush.msra.mxu0 %v106
    %335 = vmatpush.msra.mxu0 %v105
    %336 = vmatpush.msra.mxu0 %v104
    %337 = vmatpush.msra.mxu0 %v103
    %338 = vmatpush.msra.mxu0 %v102
    %339 = vmatpush.msra.mxu0 %v101
    %340 = vmatpush.msra.mxu0 %v100
    %341 = vmatmul.f32.gmra.mxu0 %v149
    %v342 = vpop.f32.mrf.mxu0
    %v343 = vadd.f32 %v230, %v342
    %344 = vmatmul.f32.gmra.mxu0 %v151
    %v345 = vpop.f32.mrf.mxu0
    %v346 = vadd.f32 %v233, %v345
    %347 = vmatmul.f32.gmra.mxu0 %v153
    %v348 = vpop.f32.mrf.mxu0
    %v349 = vadd.f32 %v236, %v348
    %350 = vmatmul.f32.gmra.mxu0 %v155
    %v351 = vpop.f32.mrf.mxu0
    %v352 = vadd.f32 %v239, %v351
    %353 = vmatmul.f32.gmra.mxu0 %v157
    %v354 = vpop.f32.mrf.mxu0
    %v355 = vadd.f32 %v242, %v354
    %356 = vmatmul.f32.gmra.mxu0 %v159
    %v357 = vpop.f32.mrf.mxu0
    %v358 = vadd.f32 %v245, %v357
    %359 = vmatmul.f32.gmra.mxu0 %v161
    %v360 = vpop.f32.mrf.mxu0
    %v361 = vadd.f32 %v248, %v360
    %362 = vmatmul.f32.gmra.mxu0 %v163
    %v363 = vpop.f32.mrf.mxu0
    %v364 = vadd.f32 %v251, %v363
    %365 = vmatmul.f32.gmra.mxu0 %v165
    %v366 = vpop.f32.mrf.mxu0
    %v367 = vadd.f32 %v254, %v366
    %368 = vmatmul.f32.gmra.mxu0 %v167
    %v369 = vpop.f32.mrf.mxu0
    %v370 = vadd.f32 %v257, %v369
    %371 = vmatmul.f32.gmra.mxu0 %v169
    %v372 = vpop.f32.mrf.mxu0
    %v373 = vadd.f32 %v260, %v372
    %374 = vmatmul.f32.gmra.mxu0 %v171
    %v375 = vpop.f32.mrf.mxu0
    %v376 = vadd.f32 %v263, %v375
    %377 = vmatmul.f32.gmra.mxu0 %v173
    %v378 = vpop.f32.mrf.mxu0
    %v379 = vadd.f32 %v266, %v378
    %380 = vmatmul.f32.gmra.mxu0 %v175
    %v381 = vpop.f32.mrf.mxu0
    %v382 = vadd.f32 %v269, %v381
    %383 = vmatmul.f32.gmra.mxu0 %v177
    %v384 = vpop.f32.mrf.mxu0
    %v385 = vadd.f32 %v272, %v384
    %386 = vmatmul.f32.gmra.mxu0 %v179
    %v387 = vpop.f32.mrf.mxu0
    %v388 = vadd.f32 %v275, %v387
    %389 = vmatmul.f32.gmra.mxu0 %v181
    %v390 = vpop.f32.mrf.mxu0
    %v391 = vadd.f32 %v278, %v390
    %392 = vmatmul.f32.gmra.mxu0 %v183
    %v393 = vpop.f32.mrf.mxu0
    %v394 = vadd.f32 %v281, %v393
    %395 = vmatmul.f32.gmra.mxu0 %v185
    %v396 = vpop.f32.mrf.mxu0
    %v397 = vadd.f32 %v284, %v396
    %398 = vmatmul.f32.gmra.mxu0 %v187
    %v399 = vpop.f32.mrf.mxu0
    %v400 = vadd.f32 %v287, %v399
    %401 = vmatmul.f32.gmra.mxu0 %v189
    %v402 = vpop.f32.mrf.mxu0
    %v403 = vadd.f32 %v290, %v402
    %404 = vmatmul.f32.gmra.mxu0 %v191
    %v405 = vpop.f32.mrf.mxu0
    %v406 = vadd.f32 %v293, %v405
    %407 = vmatmul.f32.gmra.mxu0 %v193
    %v408 = vpop.f32.mrf.mxu0
    %v409 = vadd.f32 %v296, %v408
    %410 = vmatmul.f32.gmra.mxu0 %v195
    %v411 = vpop.f32.mrf.mxu0
    %v412 = vadd.f32 %v299, %v411
    %413 = vmatmul.f32.gmra.mxu0 %v197
    %v414 = vpop.f32.mrf.mxu0
    %v415 = vadd.f32 %v302, %v414
    %416 = vmatmul.f32.gmra.mxu0 %v199
    %v417 = vpop.f32.mrf.mxu0
    %v418 = vadd.f32 %v305, %v417
    %419 = vmatmul.f32.gmra.mxu0 %v201
    %v420 = vpop.f32.mrf.mxu0
    %v421 = vadd.f32 %v308, %v420
    %422 = vmatmul.f32.gmra.mxu0 %v203
    %v423 = vpop.f32.mrf.mxu0
    %v424 = vadd.f32 %v311, %v423
    %425 = vmatmul.f32.gmra.mxu0 %v205
    %v426 = vpop.f32.mrf.mxu0
    %v427 = vadd.f32 %v314, %v426
    %428 = vmatmul.f32.gmra.mxu0 %v207
    %v429 = vpop.f32.mrf.mxu0
    %v430 = vadd.f32 %v317, %v429
    %431 = vmatmul.f32.gmra.mxu0 %v209
    %v432 = vpop.f32.mrf.mxu0
    %v433 = vadd.f32 %v320, %v432
    %434 = vmatmul.f32.gmra.mxu0 %v211
    %v435 = vpop.f32.mrf.mxu0
    %v436 = vadd.f32 %v323, %v435
    %437 = vdwg.mxu0
    %v438 = vadd.f32 %v116, %v343
    %v439 = vadd.f32 %v117, %v346
    %v440 = vadd.f32 %v118, %v349
    %v441 = vadd.f32 %v119, %v352
    %v442 = vadd.f32 %v120, %v355
    %v443 = vadd.f32 %v121, %v358
    %v444 = vadd.f32 %v122, %v361
    %v445 = vadd.f32 %v123, %v364
    %v446 = vadd.f32 %v124, %v367
    %v447 = vadd.f32 %v125, %v370
    %v448 = vadd.f32 %v126, %v373
    %v449 = vadd.f32 %v127, %v376
    %v450 = vadd.f32 %v128, %v379
    %v451 = vadd.f32 %v129, %v382
    %v452 = vadd.f32 %v130, %v385
    %v453 = vadd.f32 %v131, %v388
    %v454 = vadd.f32 %v132, %v391
    %v455 = vadd.f32 %v133, %v394
    %v456 = vadd.f32 %v134, %v397
    %v457 = vadd.f32 %v135, %v400
    %v458 = vadd.f32 %v136, %v403
    %v459 = vadd.f32 %v137, %v406
    %v460 = vadd.f32 %v138, %v409
    %v461 = vadd.f32 %v139, %v412
    %v462 = vadd.f32 %v140, %v415
    %v463 = vadd.f32 %v141, %v418
    %v464 = vadd.f32 %v142, %v421
    %v465 = vadd.f32 %v143, %v424
    %v466 = vadd.f32 %v144, %v427
    %v467 = vadd.f32 %v145, %v430
    %v468 = vadd.f32 %v146, %v433
    %v469 = vadd.f32 %v147, %v436
    %470 = vst [vmem:[#allocation9] sm:$0xff] %v438
    %471 = vst [vmem:[#allocation9 + $0x8] sm:$0xff] %v439
    %472 = vst [vmem:[#allocation9 + $0x10] sm:$0xff] %v440
    %473 = vst [vmem:[#allocation9 + $0x18] sm:$0xff] %v441
    %474 = vst [vmem:[#allocation9 + $0x20] sm:$0xff] %v442
    %475 = vst [vmem:[#allocation9 + $0x28] sm:$0xff] %v443
    %476 = vst [vmem:[#allocation9 + $0x30] sm:$0xff] %v444
    %477 = vst [vmem:[#allocation9 + $0x38] sm:$0xff] %v445
    %478 = vst [vmem:[#allocation9 + $0x40] sm:$0xff] %v446
    %479 = vst [vmem:[#allocation9 + $0x48] sm:$0xff] %v447
    %480 = vst [vmem:[#allocation9 + $0x50] sm:$0xff] %v448
    %481 = vst [vmem:[#allocation9 + $0x58] sm:$0xff] %v449
    %482 = vst [vmem:[#allocation9 + $0x60] sm:$0xff] %v450
    %483 = vst [vmem:[#allocation9 + $0x68] sm:$0xff] %v451
    %484 = vst [vmem:[#allocation9 + $0x70] sm:$0xff] %v452
    %485 = vst [vmem:[#allocation9 + $0x78] sm:$0xff] %v453
    %486 = vst [vmem:[#allocation9 + $0x80] sm:$0xff] %v454
    %487 = vst [vmem:[#allocation9 + $0x88] sm:$0xff] %v455
    %488 = vst [vmem:[#allocation9 + $0x90] sm:$0xff] %v456
    %489 = vst [vmem:[#allocation9 + $0x98] sm:$0xff] %v457
    %490 = vst [vmem:[#allocation9 + $0xa0] sm:$0xff] %v458
    %491 = vst [vmem:[#allocation9 + $0xa8] sm:$0xff] %v459
    %492 = vst [vmem:[#allocation9 + $0xb0] sm:$0xff] %v460
    %493 = vst [vmem:[#allocation9 + $0xb8] sm:$0xff] %v461
    %494 = vst [vmem:[#allocation9 + $0xc0] sm:$0xff] %v462
    %495 = vst [vmem:[#allocation9 + $0xc8] sm:$0xff] %v463
    %496 = vst [vmem:[#allocation9 + $0xd0] sm:$0xff] %v464
    %497 = vst [vmem:[#allocation9 + $0xd8] sm:$0xff] %v465
    %498 = vst [vmem:[#allocation9 + $0xe0] sm:$0xff] %v466
    %499 = vst [vmem:[#allocation9 + $0xe8] sm:$0xff] %v467
    %500 = vst [vmem:[#allocation9 + $0xf0] sm:$0xff] %v468
    %501 = vst [vmem:[#allocation9 + $0xf8] sm:$0xff] %v469
    // Predicated region
    $region22: #{tpu_custom_call.1} parent=1 // pred_check
      %p502 = pneg %p46
    $region23: #{tpu_custom_call.1} parent=1 // pred_check_branch
      %504 = sbr.rel (%p502) target = $region25
    $region24: #{tpu_custom_call.1} parent=1 // pred_region
      %s505 = sld [smem:[#allocation3]]
      %v506 = vld [vmem:[#allocation9] sm:$0xff]
      %v507 = vld [vmem:[#allocation9 + $0x8] sm:$0xff]
      %v508 = vld [vmem:[#allocation9 + $0x10] sm:$0xff]
      %v509 = vld [vmem:[#allocation9 + $0x18] sm:$0xff]
      %v510 = vld [vmem:[#allocation9 + $0x20] sm:$0xff]
      %v511 = vld [vmem:[#allocation9 + $0x28] sm:$0xff]
      %v512 = vld [vmem:[#allocation9 + $0x30] sm:$0xff]
      %v513 = vld [vmem:[#allocation9 + $0x38] sm:$0xff]
      %v514 = vld [vmem:[#allocation9 + $0x40] sm:$0xff]
      %v515 = vld [vmem:[#allocation9 + $0x48] sm:$0xff]
      %v516 = vld [vmem:[#allocation9 + $0x50] sm:$0xff]
      %v517 = vld [vmem:[#allocation9 + $0x58] sm:$0xff]
      %v518 = vld [vmem:[#allocation9 + $0x60] sm:$0xff]
      %v519 = vld [vmem:[#allocation9 + $0x68] sm:$0xff]
      %v520 = vld [vmem:[#allocation9 + $0x70] sm:$0xff]
      %v521 = vld [vmem:[#allocation9 + $0x78] sm:$0xff]
      %v522 = vld [vmem:[#allocation9 + $0x80] sm:$0xff]
      %v523 = vld [vmem:[#allocation9 + $0x88] sm:$0xff]
      %v524 = vld [vmem:[#allocation9 + $0x90] sm:$0xff]
      %v525 = vld [vmem:[#allocation9 + $0x98] sm:$0xff]
      %v526 = vld [vmem:[#allocation9 + $0xa0] sm:$0xff]
      %v527 = vld [vmem:[#allocation9 + $0xa8] sm:$0xff]
      %v528 = vld [vmem:[#allocation9 + $0xb0] sm:$0xff]
      %v529 = vld [vmem:[#allocation9 + $0xb8] sm:$0xff]
      %v530 = vld [vmem:[#allocation9 + $0xc0] sm:$0xff]
      %v531 = vld [vmem:[#allocation9 + $0xc8] sm:$0xff]
      %v532 = vld [vmem:[#allocation9 + $0xd0] sm:$0xff]
      %v533 = vld [vmem:[#allocation9 + $0xd8] sm:$0xff]
      %v534 = vld [vmem:[#allocation9 + $0xe0] sm:$0xff]
      %v535 = vld [vmem:[#allocation9 + $0xe8] sm:$0xff]
      %v536 = vld [vmem:[#allocation9 + $0xf0] sm:$0xff]
      %v537 = vld [vmem:[#allocation9 + $0xf8] sm:$0xff]
      %v538 = vstv %s505
      %v539 = vmul.f32 %v538, %v506
      %v540 = vmul.f32 %v538, %v507
      %v541 = vmul.f32 %v538, %v508
      %v542 = vmul.f32 %v538, %v509
      %v543 = vmul.f32 %v538, %v510
      %v544 = vmul.f32 %v538, %v511
      %v545 = vmul.f32 %v538, %v512
      %v546 = vmul.f32 %v538, %v513
      %v547 = vmul.f32 %v538, %v514
      %v548 = vmul.f32 %v538, %v515
      %v549 = vmul.f32 %v538, %v516
      %v550 = vmul.f32 %v538, %v517
      %v551 = vmul.f32 %v538, %v518
      %v552 = vmul.f32 %v538, %v519
      %v553 = vmul.f32 %v538, %v520
      %v554 = vmul.f32 %v538, %v521
      %v555 = vmul.f32 %v538, %v522
      %v556 = vmul.f32 %v538, %v523
      %v557 = vmul.f32 %v538, %v524
      %v558 = vmul.f32 %v538, %v525
      %v559 = vmul.f32 %v538, %v526
      %v560 = vmul.f32 %v538, %v527
      %v561 = vmul.f32 %v538, %v528
      %v562 = vmul.f32 %v538, %v529
      %v563 = vmul.f32 %v538, %v530
      %v564 = vmul.f32 %v538, %v531
      %v565 = vmul.f32 %v538, %v532
      %v566 = vmul.f32 %v538, %v533
      %v567 = vmul.f32 %v538, %v534
      %v568 = vmul.f32 %v538, %v535
      %v569 = vmul.f32 %v538, %v536
      %v570 = vmul.f32 %v538, %v537
      %571 = vst [vmem:[#allocation9] sm:$0xff] %v539
      %572 = vst [vmem:[#allocation9 + $0x8] sm:$0xff] %v540
      %573 = vst [vmem:[#allocation9 + $0x10] sm:$0xff] %v541
      %574 = vst [vmem:[#allocation9 + $0x18] sm:$0xff] %v542
      %575 = vst [vmem:[#allocation9 + $0x20] sm:$0xff] %v543
      %576 = vst [vmem:[#allocation9 + $0x28] sm:$0xff] %v544
      %577 = vst [vmem:[#allocation9 + $0x30] sm:$0xff] %v545
      %578 = vst [vmem:[#allocation9 + $0x38] sm:$0xff] %v546
      %579 = vst [vmem:[#allocation9 + $0x40] sm:$0xff] %v547
      %580 = vst [vmem:[#allocation9 + $0x48] sm:$0xff] %v548
      %581 = vst [vmem:[#allocation9 + $0x50] sm:$0xff] %v549
      %582 = vst [vmem:[#allocation9 + $0x58] sm:$0xff] %v550
      %583 = vst [vmem:[#allocation9 + $0x60] sm:$0xff] %v551
      %584 = vst [vmem:[#allocation9 + $0x68] sm:$0xff] %v552
      %585 = vst [vmem:[#allocation9 + $0x70] sm:$0xff] %v553
      %586 = vst [vmem:[#allocation9 + $0x78] sm:$0xff] %v554
      %587 = vst [vmem:[#allocation9 + $0x80] sm:$0xff] %v555
      %588 = vst [vmem:[#allocation9 + $0x88] sm:$0xff] %v556
      %589 = vst [vmem:[#allocation9 + $0x90] sm:$0xff] %v557
      %590 = vst [vmem:[#allocation9 + $0x98] sm:$0xff] %v558
      %591 = vst [vmem:[#allocation9 + $0xa0] sm:$0xff] %v559
      %592 = vst [vmem:[#allocation9 + $0xa8] sm:$0xff] %v560
      %593 = vst [vmem:[#allocation9 + $0xb0] sm:$0xff] %v561
      %594 = vst [vmem:[#allocation9 + $0xb8] sm:$0xff] %v562
      %595 = vst [vmem:[#allocation9 + $0xc0] sm:$0xff] %v563
      %596 = vst [vmem:[#allocation9 + $0xc8] sm:$0xff] %v564
      %597 = vst [vmem:[#allocation9 + $0xd0] sm:$0xff] %v565
      %598 = vst [vmem:[#allocation9 + $0xd8] sm:$0xff] %v566
      %599 = vst [vmem:[#allocation9 + $0xe0] sm:$0xff] %v567
      %600 = vst [vmem:[#allocation9 + $0xe8] sm:$0xff] %v568
      %601 = vst [vmem:[#allocation9 + $0xf0] sm:$0xff] %v569
      %602 = vst [vmem:[#allocation9 + $0xf8] sm:$0xff] %v570
    $region25: #{tpu_custom_call.1} parent=1 // pred_fallthru
      _
    // Predicated region
    $region26: #{tpu_custom_call.1} parent=1 // pred_check
      _
    $region27: #{tpu_custom_call.1} parent=1 // pred_check_branch
      %604 = sbr.rel (0) target = $region29
    $region28: #{tpu_custom_call.1} parent=1 // pred_region
      %606 = vsyncadd [#allocation6], 0
      %s607 = sshll.u32 [#allocation9], 4
      %s608 = int_to_ptr.vmem [resolvable:$true] %s607
      %s609 = sshll.u32 %s3, 4
      %s610 = int_to_ptr.hbm [resolvable:$true] %s609
      %615 = dma.vmem_to_hbm [thread:$0]  %s608, 4096, %s610, [#allocation6], 128, 128, 8
    $region29: #{tpu_custom_call.1} parent=1 // pred_fallthru
      _
    // Predicated region
    $region30: #{tpu_custom_call.1} parent=1 // pred_check
      _
    $region31: #{tpu_custom_call.1} parent=1 // pred_check_branch
      %617 = sbr.rel (0) target = $region33
    $region32: #{tpu_custom_call.1} parent=1 // pred_region
      %619 = dma.done [#allocation6], 4096
    $region33: #{tpu_custom_call.1} parent=1 // pred_fallthru
      _
    %620 = vsyncpa [#allocation5], 1
    %621 = vsyncpa [#allocation8], 1
    %622 = vsyncpa [#allocation6], 1

</llo_original>
